<compile_context>
chip_gen: v7x
topology: tpu7x:2x2x1
jax: 0.10.0
libtpu: 0.0.40
codegen_flags: <defaults>
</compile_context>

<pallas_src>
import jax
import jax.numpy as jnp
from jax.experimental import pallas as pl
from jax.experimental.pallas import tpu as pltpu

EPS = 1e-5


def _round_up(v, m):
    return (v + m - 1) // m * m


def resblock_forward(x_nchw, params):
    """x_nchw: (N, Cin, H, W) float. params = (w1, g1, b1, w2, g2, b2, ws) with
    w1: (3,3,Cin,Cout) HWIO, w2: (3,3,Cout,Cout) HWIO, ws: (Cin,Cout), g*/b*: (C,)."""
    w1, g1, b1, w2, g2, b2, ws = params
    N, Cin, H, W = x_nchw.shape
    KH, KW, _, Cout = w1.shape
    P = H * W
    NP = N * P
    Ci8 = _round_up(Cin, 8)          # pad in-channels so sublane blocks stay 8-aligned
    f32 = jnp.float32
    bf16 = jnp.bfloat16

    assert Cout % 8 == 0, "out_channels must be a multiple of 8 for this kernel"
    assert NP % 128 == 0, "N*H*W must be a multiple of 128 (lane-dense layout)"
    # TODO(synk): general Ci8 != Cout needs per-layer patch row strides / scratch size.
    assert Ci8 == Cout, "shared patch scratch assumes padded in-channels == out-channels"

    C = Cout                         # channel row-stride inside the patch matrix
    K = 10 * C                       # 9 taps + (shortcut | zero) tail rows

    # ---- activations: (C, N*P) channels-in-sublanes / pixels-in-lanes layout ----
    x = x_nchw.astype(f32).reshape(N, Cin, P).transpose(1, 0, 2).reshape(Cin, NP)
    x = jnp.pad(x, ((0, Ci8 - Cin), (0, 0)))                              # (C, NP)

    # ---- weights: im2col layout; shortcut fused block-diagonally into layer 1 ----
    w1m = jnp.pad(w1.astype(f32), ((0, 0), (0, 0), (0, Ci8 - Cin), (0, 0)))
    w1m = w1m.reshape(KH * KW * Ci8, Cout).T                              # (Cout, 9C)
    w2m = w2.astype(f32).reshape(KH * KW * Cout, Cout).T                  # (Cout, 9C)
    wsm = jnp.pad(ws.astype(f32), ((0, Ci8 - Cin), (0, 0))).T             # (Cout, C)

    wbig1 = jnp.zeros((2 * Cout, K), f32)
    wbig1 = wbig1.at[:Cout, :9 * C].set(w1m)        # rows 0..Cout-1  -> y1
    wbig1 = wbig1.at[Cout:, 9 * C:].set(wsm)        # rows Cout..2Cout-1 -> skip
    w2big = jnp.zeros((Cout, K), f32).at[:, :9 * C].set(w2m)  # last C cols stay zero
    wbuf = jnp.concatenate([wbig1, w2big], axis=0).astype(bf16)           # (3*Cout, K)

    # ---- BN affine params packed into one (C, 4) tile (broadcasts over lanes) ----
    bn = jnp.zeros((C, 4), f32)
    bn = bn.at[:Cin, 0].set(g1.astype(f32)).at[:Cin, 1].set(b1.astype(f32))
    bn = bn.at[:Cout, 2].set(g2.astype(f32)).at[:Cout, 3].set(b2.astype(f32))

    # ---- constant tap masks / lane shifts (built from lane % P: no cross-image leak) ----
    taps = [(dy, dx) for dy in (-1, 0, 1) for dx in (-1, 0, 1)]
    lane = jnp.arange(NP)
    hh = (lane % P) // W
    ww = (lane % P) % W
    masks = jnp.stack(
        [((hh + dy >= 0) & (hh + dy < H) & (ww + dx >= 0) & (ww + dx < W))
         for dy, dx in taps], axis=0).astype(f32)                         # (9, NP)
    shifts = [(-(dy * W + dx)) % NP for dy, dx in taps]                   # result[l]=a[l+dy*W+dx]

    def kernel(x_ref, w_ref, bn_ref, mask_ref, out_ref, patch_ref):
        xv = x_ref[...]                                                   # (C, NP) f32

        def bn_relu(v, gamma, beta):
            # Training-mode BN (biased variance) over all N*H*W lanes; folded into
            # a single per-channel scale/shift, then ReLU. All f32 (v5e-safe).
            cnt = v.shape[1]
            s1 = jnp.sum(v, axis=1, keepdims=True)
            s2 = jnp.sum(v * v, axis=1, keepdims=True)
            mean = s1 / cnt
            var = jnp.maximum(s2 / cnt - mean * mean, 0.0)                # clamp cancellation
            scale = gamma * jax.lax.rsqrt(var + EPS)
            shift = beta - mean * scale
            return jnp.maximum(v * scale + shift, 0.0)

        def masked_tap(a, t):
            s = shifts[t]
            if s == 0:                                   # center tap: always valid
                return a
            return pltpu.roll(a, s, axis=1) * mask_ref[t:t + 1, :]        # XLU + VPU

        def build_patches(a, tail):
            # Fill the bf16 patch scratch with 16-sublane-aligned paired writes.
            for t in range(0, 8, 2):
                blk = jnp.concatenate([masked_tap(a, t), masked_tap(a, t + 1)], axis=0)
                patch_ref[t * C:(t + 2) * C, :] = blk.astype(bf16)
            blk = jnp.concatenate([masked_tap(a, 8), tail], axis=0)
            patch_ref[8 * C:10 * C, :] = blk.astype(bf16)

        # layer 1: BN -> ReLU -> conv3x3 fused with the 1x1 shortcut (one matmul)
        a1 = bn_relu(xv, bn_ref[:, 0:1], bn_ref[:, 1:2])
        build_patches(a1, xv)                                             # tail = shortcut input
        res1 = jnp.dot(w_ref[0:2 * Cout, :], patch_ref[...],
                       preferred_element_type=jnp.float32)                # (2*Cout, NP)
        y1 = res1[:Cout, :]
        skip = res1[Cout:, :]

        # layer 2: BN -> ReLU -> conv3x3 (one matmul; zero tail x zero weight cols)
        a2 = bn_relu(y1, bn_ref[:, 2:3], bn_ref[:, 3:4])
        build_patches(a2, jnp.zeros_like(a2))
        y2 = jnp.dot(w_ref[2 * Cout:3 * Cout, :], patch_ref[...],
                     preferred_element_type=jnp.float32)                  # (Cout, NP)

        # crop_to_shape is a no-op for this config -> just add. Lane-dense store.
        out_ref[...] = (y2 + skip).astype(out_ref.dtype)

    # TODO(synk): for larger N/H/W add a grid over batch/row tiles with
    # dimension_semantics=("parallel", ...) (megacore on v7x) and a two-pass BN
    # (stats kernel then normalize); re-derive VMEM sizing for v7x's 64 MiB and
    # set vmem_limit_bytes explicitly.
    out = pl.pallas_call(
        kernel,
        out_shape=jax.ShapeDtypeStruct((Cout, NP), f32),
        in_specs=[pl.BlockSpec(memory_space=pltpu.MemorySpace.VMEM)] * 4,
        out_specs=pl.BlockSpec(memory_space=pltpu.MemorySpace.VMEM),
        scratch_shapes=[pltpu.VMEM((K, NP), bf16)],
    )(x, wbuf, bn, masks)

    # (Cout, N*P) -> (N, Cout, H, W): tiny wrapper-side transpose back.
    return out.reshape(Cout, N, P).transpose(1, 0, 2).reshape(N, Cout, H, W)


def resblock_reference(x_nchw, params):
    """Pure-JAX reference (lax conv, f32 HIGHEST precision) for correctness checking."""
    w1, g1, b1, w2, g2, b2, ws = params
    x = jnp.transpose(x_nchw, (0, 2, 3, 1)).astype(jnp.float32)

    def bn_relu(v, g, b):
        m = jnp.mean(v, axis=(0, 1, 2), keepdims=True)
        var = jnp.mean((v - m) ** 2, axis=(0, 1, 2), keepdims=True)
        return jnp.maximum((v - m) * jax.lax.rsqrt(var + EPS) * g + b, 0.0)

    def conv(v, w, pad):
        return jax.lax.conv_general_dilated(
            v, w, window_strides=(1, 1),
            padding=[(pad, pad), (pad, pad)],
            dimension_numbers=("NHWC", "HWIO", "NHWC"),
            precision=jax.lax.Precision.HIGHEST)

    h = conv(bn_relu(x, g1, b1), w1, 1)
    h = conv(bn_relu(h, g2, b2), w2, 1)
    skip = conv(x, ws.reshape(1, 1, ws.shape[0], ws.shape[1]), 0)
    return jnp.transpose(h + skip, (0, 3, 1, 2))


if __name__ == "__main__":
    N, Cin, Cout, H, W, K = 2, 4, 8, 16, 16, 3

    key = jax.random.PRNGKey(0)
    kx, k1, k2, k3, k4, k5, k6, k7 = jax.random.split(key, 8)

    x = jax.random.normal(kx, (N, Cin, H, W), jnp.float32)

    # Deterministic parameter init (kaiming-like scale for convs; BN affine params).
    w1 = jax.random.normal(k1, (K, K, Cin, Cout), jnp.float32) / jnp.sqrt(K * K * Cin)
    w2 = jax.random.normal(k2, (K, K, Cout, Cout), jnp.float32) / jnp.sqrt(K * K * Cout)
    ws = jax.random.normal(k3, (Cin, Cout), jnp.float32) / jnp.sqrt(Cin)   # 1x1 shortcut
    g1 = 1.0 + 0.1 * jax.random.normal(k4, (Cin,), jnp.float32)
    b1 = 0.1 * jax.random.normal(k5, (Cin,), jnp.float32)
    g2 = 1.0 + 0.1 * jax.random.normal(k6, (Cout,), jnp.float32)
    b2 = 0.1 * jax.random.normal(k7, (Cout,), jnp.float32)

    params = (w1, g1, b1, w2, g2, b2, ws)

    out = resblock_forward(x, params)
    out = jax.block_until_ready(out)

    ref = resblock_reference(x, params)
    max_err = float(jnp.max(jnp.abs(out - ref)))
    assert out.shape == (N, Cout, H, W), out.shape
    # bf16 MXU operands (weights + im2col patches) -> tolerance sized for bf16 matmuls.
    assert max_err < 2e-2, f"max abs error {max_err}"

    print("KERNEL_OK")
</pallas_src>

<mosaic_0001>
module attributes {stable_mosaic.version = 11 : i64} {
  func.func @kernel(%arg0: memref<8x512xf32, #tpu.memory_space<vmem>>, %arg1: memref<24x80xbf16, #tpu.memory_space<vmem>>, %arg2: memref<8x4xf32, #tpu.memory_space<vmem>>, %arg3: memref<9x512xf32, #tpu.memory_space<vmem>>, %arg4: memref<8x512xf32, #tpu.memory_space<vmem>>, %arg5: memref<80x512xbf16, #tpu.memory_space<vmem>>) attributes {dimension_semantics = [], scalar_prefetch = 0 : i64, scratch_operands = 1 : i64, tpu.core_type = #tpu.core_type<tc>} {
    %c0 = arith.constant 0 : index
    %c0_0 = arith.constant 0 : index
    %0 = vector.load %arg0[%c0, %c0_0] : memref<8x512xf32, #tpu.memory_space<vmem>>, vector<8x512xf32>
    %c0_1 = arith.constant 0 : index
    %c0_2 = arith.constant 0 : index
    %1 = vector.load %arg2[%c0_1, %c0_2] : memref<8x4xf32, #tpu.memory_space<vmem>>, vector<8x1xf32>
    %c0_3 = arith.constant 0 : index
    %c1 = arith.constant 1 : index
    %2 = vector.load %arg2[%c0_3, %c1] : memref<8x4xf32, #tpu.memory_space<vmem>>, vector<8x1xf32>
    %cst = arith.constant dense<0.000000e+00> : vector<8xf32>
    %3 = vector.multi_reduction <add>, %0, %cst [1] : vector<8x512xf32> to vector<8xf32>
    %4 = vector.shape_cast %3 : vector<8xf32> to vector<8x1xf32>
    %5 = arith.mulf %0, %0 : vector<8x512xf32>
    %cst_4 = arith.constant dense<0.000000e+00> : vector<8xf32>
    %6 = vector.multi_reduction <add>, %5, %cst_4 [1] : vector<8x512xf32> to vector<8xf32>
    %7 = vector.shape_cast %6 : vector<8xf32> to vector<8x1xf32>
    %cst_5 = arith.constant 5.120000e+02 : f32
    %8 = vector.broadcast %cst_5 : f32 to vector<8x1xf32>
    %9 = arith.divf %4, %8 : vector<8x1xf32>
    %cst_6 = arith.constant 5.120000e+02 : f32
    %10 = vector.broadcast %cst_6 : f32 to vector<8x1xf32>
    %11 = arith.divf %7, %10 : vector<8x1xf32>
    %12 = arith.mulf %9, %9 : vector<8x1xf32>
    %13 = arith.subf %11, %12 : vector<8x1xf32>
    %cst_7 = arith.constant 0.000000e+00 : f32
    %14 = vector.broadcast %cst_7 : f32 to vector<8x1xf32>
    %15 = arith.maximumf %13, %14 : vector<8x1xf32>
    %cst_8 = arith.constant 9.99999974E-6 : f32
    %16 = vector.broadcast %cst_8 : f32 to vector<8x1xf32>
    %17 = arith.addf %15, %16 : vector<8x1xf32>
    %18 = math.rsqrt %17 : vector<8x1xf32>
    %19 = arith.mulf %1, %18 : vector<8x1xf32>
    %20 = arith.mulf %9, %19 : vector<8x1xf32>
    %21 = arith.subf %2, %20 : vector<8x1xf32>
    %22 = vector.broadcast %19 : vector<8x1xf32> to vector<8x512xf32>
    %23 = arith.mulf %0, %22 : vector<8x512xf32>
    %24 = vector.broadcast %21 : vector<8x1xf32> to vector<8x512xf32>
    %25 = arith.addf %23, %24 : vector<8x512xf32>
    %cst_9 = arith.constant 0.000000e+00 : f32
    %26 = vector.broadcast %cst_9 : f32 to vector<8x512xf32>
    %27 = arith.maximumf %25, %26 : vector<8x512xf32>
    %c17_i32 = arith.constant 17 : i32
    %28 = tpu.dynamic_rotate %27 by %c17_i32 dim 1 : vector<8x512xf32>, i32 -> vector<8x512xf32>
    %c0_10 = arith.constant 0 : index
    %c0_11 = arith.constant 0 : index
    %29 = vector.load %arg3[%c0_10, %c0_11] : memref<9x512xf32, #tpu.memory_space<vmem>>, vector<1x512xf32>
    %30 = vector.broadcast %29 : vector<1x512xf32> to vector<8x512xf32>
    %31 = arith.mulf %28, %30 : vector<8x512xf32>
    %c16_i32 = arith.constant 16 : i32
    %32 = tpu.dynamic_rotate %27 by %c16_i32 dim 1 : vector<8x512xf32>, i32 -> vector<8x512xf32>
    %c1_12 = arith.constant 1 : index
    %c0_13 = arith.constant 0 : index
    %33 = vector.load %arg3[%c1_12, %c0_13] : memref<9x512xf32, #tpu.memory_space<vmem>>, vector<1x512xf32>
    %34 = vector.broadcast %33 : vector<1x512xf32> to vector<8x512xf32>
    %35 = arith.mulf %32, %34 : vector<8x512xf32>
    %36 = tpu.concatenate %31, %35 in 0 : vector<8x512xf32>, vector<8x512xf32> -> vector<16x512xf32>
    %37 = arith.truncf %36 : vector<16x512xf32> to vector<16x512xbf16>
    %c0_14 = arith.constant 0 : index
    %c0_15 = arith.constant 0 : index
    %38 = vector.load %arg5[%c0_14, %c0_15] : memref<80x512xbf16, #tpu.memory_space<vmem>>, vector<16x512xbf16>
    tpu.vector_store %arg5[%c0_14, %c0_15], %37 {strides = array<i32>} : memref<80x512xbf16, #tpu.memory_space<vmem>>, vector<16x512xbf16>,
    %c15_i32 = arith.constant 15 : i32
    %39 = tpu.dynamic_rotate %27 by %c15_i32 dim 1 : vector<8x512xf32>, i32 -> vector<8x512xf32>
    %c2 = arith.constant 2 : index
    %c0_16 = arith.constant 0 : index
    %40 = vector.load %arg3[%c2, %c0_16] : memref<9x512xf32, #tpu.memory_space<vmem>>, vector<1x512xf32>
    %41 = vector.broadcast %40 : vector<1x512xf32> to vector<8x512xf32>
    %42 = arith.mulf %39, %41 : vector<8x512xf32>
    %c1_i32 = arith.constant 1 : i32
    %43 = tpu.dynamic_rotate %27 by %c1_i32 dim 1 : vector<8x512xf32>, i32 -> vector<8x512xf32>
    %c3 = arith.constant 3 : index
    %c0_17 = arith.constant 0 : index
    %44 = vector.load %arg3[%c3, %c0_17] : memref<9x512xf32, #tpu.memory_space<vmem>>, vector<1x512xf32>
    %45 = vector.broadcast %44 : vector<1x512xf32> to vector<8x512xf32>
    %46 = arith.mulf %43, %45 : vector<8x512xf32>
    %47 = tpu.concatenate %42, %46 in 0 : vector<8x512xf32>, vector<8x512xf32> -> vector<16x512xf32>
    %48 = arith.truncf %47 : vector<16x512xf32> to vector<16x512xbf16>
    %c16 = arith.constant 16 : index
    %c0_18 = arith.constant 0 : index
    %49 = vector.load %arg5[%c16, %c0_18] : memref<80x512xbf16, #tpu.memory_space<vmem>>, vector<16x512xbf16>
    tpu.vector_store %arg5[%c16, %c0_18], %48 {strides = array<i32>} : memref<80x512xbf16, #tpu.memory_space<vmem>>, vector<16x512xbf16>,
    %c511_i32 = arith.constant 511 : i32
    %50 = tpu.dynamic_rotate %27 by %c511_i32 dim 1 : vector<8x512xf32>, i32 -> vector<8x512xf32>
    %c5 = arith.constant 5 : index
    %c0_19 = arith.constant 0 : index
    %51 = vector.load %arg3[%c5, %c0_19] : memref<9x512xf32, #tpu.memory_space<vmem>>, vector<1x512xf32>
    %52 = vector.broadcast %51 : vector<1x512xf32> to vector<8x512xf32>
    %53 = arith.mulf %50, %52 : vector<8x512xf32>
    %54 = tpu.concatenate %27, %53 in 0 : vector<8x512xf32>, vector<8x512xf32> -> vector<16x512xf32>
    %55 = arith.truncf %54 : vector<16x512xf32> to vector<16x512xbf16>
    %c32 = arith.constant 32 : index
    %c0_20 = arith.constant 0 : index
    %56 = vector.load %arg5[%c32, %c0_20] : memref<80x512xbf16, #tpu.memory_space<vmem>>, vector<16x512xbf16>
    tpu.vector_store %arg5[%c32, %c0_20], %55 {strides = array<i32>} : memref<80x512xbf16, #tpu.memory_space<vmem>>, vector<16x512xbf16>,
    %c497_i32 = arith.constant 497 : i32
    %57 = tpu.dynamic_rotate %27 by %c497_i32 dim 1 : vector<8x512xf32>, i32 -> vector<8x512xf32>
    %c6 = arith.constant 6 : index
    %c0_21 = arith.constant 0 : index
    %58 = vector.load %arg3[%c6, %c0_21] : memref<9x512xf32, #tpu.memory_space<vmem>>, vector<1x512xf32>
    %59 = vector.broadcast %58 : vector<1x512xf32> to vector<8x512xf32>
    %60 = arith.mulf %57, %59 : vector<8x512xf32>
    %c496_i32 = arith.constant 496 : i32
    %61 = tpu.dynamic_rotate %27 by %c496_i32 dim 1 : vector<8x512xf32>, i32 -> vector<8x512xf32>
    %c7 = arith.constant 7 : index
    %c0_22 = arith.constant 0 : index
    %62 = vector.load %arg3[%c7, %c0_22] : memref<9x512xf32, #tpu.memory_space<vmem>>, vector<1x512xf32>
    %63 = vector.broadcast %62 : vector<1x512xf32> to vector<8x512xf32>
    %64 = arith.mulf %61, %63 : vector<8x512xf32>
    %65 = tpu.concatenate %60, %64 in 0 : vector<8x512xf32>, vector<8x512xf32> -> vector<16x512xf32>
    %66 = arith.truncf %65 : vector<16x512xf32> to vector<16x512xbf16>
    %c48 = arith.constant 48 : index
    %c0_23 = arith.constant 0 : index
    %67 = vector.load %arg5[%c48, %c0_23] : memref<80x512xbf16, #tpu.memory_space<vmem>>, vector<16x512xbf16>
    tpu.vector_store %arg5[%c48, %c0_23], %66 {strides = array<i32>} : memref<80x512xbf16, #tpu.memory_space<vmem>>, vector<16x512xbf16>,
    %c495_i32 = arith.constant 495 : i32
    %68 = tpu.dynamic_rotate %27 by %c495_i32 dim 1 : vector<8x512xf32>, i32 -> vector<8x512xf32>
    %c8 = arith.constant 8 : index
    %c0_24 = arith.constant 0 : index
    %69 = vector.load %arg3[%c8, %c0_24] : memref<9x512xf32, #tpu.memory_space<vmem>>, vector<1x512xf32>
    %70 = vector.broadcast %69 : vector<1x512xf32> to vector<8x512xf32>
    %71 = arith.mulf %68, %70 : vector<8x512xf32>
    %72 = tpu.concatenate %71, %0 in 0 : vector<8x512xf32>, vector<8x512xf32> -> vector<16x512xf32>
    %73 = arith.truncf %72 : vector<16x512xf32> to vector<16x512xbf16>
    %c64 = arith.constant 64 : index
    %c0_25 = arith.constant 0 : index
    %74 = vector.load %arg5[%c64, %c0_25] : memref<80x512xbf16, #tpu.memory_space<vmem>>, vector<16x512xbf16>
    tpu.vector_store %arg5[%c64, %c0_25], %73 {strides = array<i32>} : memref<80x512xbf16, #tpu.memory_space<vmem>>, vector<16x512xbf16>,
    %c0_26 = arith.constant 0 : index
    %c0_27 = arith.constant 0 : index
    %75 = vector.load %arg1[%c0_26, %c0_27] : memref<24x80xbf16, #tpu.memory_space<vmem>>, vector<16x80xbf16>
    %c0_28 = arith.constant 0 : index
    %c0_29 = arith.constant 0 : index
    %76 = vector.load %arg5[%c0_28, %c0_29] : memref<80x512xbf16, #tpu.memory_space<vmem>>, vector<80x512xbf16>
    %cst_30 = arith.constant dense<0.000000e+00> : vector<16x512xf32>
    %77 = tpu.matmul %75, %76, %cst_30 {dimension_numbers = #tpu.dot_dimension_numbers<[1], [0], [0], [1], [0, 0, 1, 1], [], []>} : vector<16x80xbf16>, vector<80x512xbf16>, vector<16x512xf32> -> vector<16x512xf32>
    %78 = vector.extract_strided_slice %77 {offsets = [0, 0], sizes = [8, 512], strides = [1, 1]} : vector<16x512xf32> to vector<8x512xf32>
    %79 = vector.extract_strided_slice %77 {offsets = [8, 0], sizes = [8, 512], strides = [1, 1]} : vector<16x512xf32> to vector<8x512xf32>
    %c0_31 = arith.constant 0 : index
    %c2_32 = arith.constant 2 : index
    %80 = vector.load %arg2[%c0_31, %c2_32] : memref<8x4xf32, #tpu.memory_space<vmem>>, vector<8x1xf32>
    %c0_33 = arith.constant 0 : index
    %c3_34 = arith.constant 3 : index
    %81 = vector.load %arg2[%c0_33, %c3_34] : memref<8x4xf32, #tpu.memory_space<vmem>>, vector<8x1xf32>
    %cst_35 = arith.constant dense<0.000000e+00> : vector<8xf32>
    %82 = vector.multi_reduction <add>, %78, %cst_35 [1] : vector<8x512xf32> to vector<8xf32>
    %83 = vector.shape_cast %82 : vector<8xf32> to vector<8x1xf32>
    %84 = arith.mulf %78, %78 : vector<8x512xf32>
    %cst_36 = arith.constant dense<0.000000e+00> : vector<8xf32>
    %85 = vector.multi_reduction <add>, %84, %cst_36 [1] : vector<8x512xf32> to vector<8xf32>
    %86 = vector.shape_cast %85 : vector<8xf32> to vector<8x1xf32>
    %cst_37 = arith.constant 5.120000e+02 : f32
    %87 = vector.broadcast %cst_37 : f32 to vector<8x1xf32>
    %88 = arith.divf %83, %87 : vector<8x1xf32>
    %cst_38 = arith.constant 5.120000e+02 : f32
    %89 = vector.broadcast %cst_38 : f32 to vector<8x1xf32>
    %90 = arith.divf %86, %89 : vector<8x1xf32>
    %91 = arith.mulf %88, %88 : vector<8x1xf32>
    %92 = arith.subf %90, %91 : vector<8x1xf32>
    %cst_39 = arith.constant 0.000000e+00 : f32
    %93 = vector.broadcast %cst_39 : f32 to vector<8x1xf32>
    %94 = arith.maximumf %92, %93 : vector<8x1xf32>
    %cst_40 = arith.constant 9.99999974E-6 : f32
    %95 = vector.broadcast %cst_40 : f32 to vector<8x1xf32>
    %96 = arith.addf %94, %95 : vector<8x1xf32>
    %97 = math.rsqrt %96 : vector<8x1xf32>
    %98 = arith.mulf %80, %97 : vector<8x1xf32>
    %99 = arith.mulf %88, %98 : vector<8x1xf32>
    %100 = arith.subf %81, %99 : vector<8x1xf32>
    %101 = vector.broadcast %98 : vector<8x1xf32> to vector<8x512xf32>
    %102 = arith.mulf %78, %101 : vector<8x512xf32>
    %103 = vector.broadcast %100 : vector<8x1xf32> to vector<8x512xf32>
    %104 = arith.addf %102, %103 : vector<8x512xf32>
    %cst_41 = arith.constant 0.000000e+00 : f32
    %105 = vector.broadcast %cst_41 : f32 to vector<8x512xf32>
    %106 = arith.maximumf %104, %105 : vector<8x512xf32>
    %cst_42 = arith.constant 0.000000e+00 : f32
    %107 = vector.broadcast %cst_42 : f32 to vector<8x512xf32>
    %c17_i32_43 = arith.constant 17 : i32
    %108 = tpu.dynamic_rotate %106 by %c17_i32_43 dim 1 : vector<8x512xf32>, i32 -> vector<8x512xf32>
    %c0_44 = arith.constant 0 : index
    %c0_45 = arith.constant 0 : index
    %109 = vector.load %arg3[%c0_44, %c0_45] : memref<9x512xf32, #tpu.memory_space<vmem>>, vector<1x512xf32>
    %110 = vector.broadcast %109 : vector<1x512xf32> to vector<8x512xf32>
    %111 = arith.mulf %108, %110 : vector<8x512xf32>
    %c16_i32_46 = arith.constant 16 : i32
    %112 = tpu.dynamic_rotate %106 by %c16_i32_46 dim 1 : vector<8x512xf32>, i32 -> vector<8x512xf32>
    %c1_47 = arith.constant 1 : index
    %c0_48 = arith.constant 0 : index
    %113 = vector.load %arg3[%c1_47, %c0_48] : memref<9x512xf32, #tpu.memory_space<vmem>>, vector<1x512xf32>
    %114 = vector.broadcast %113 : vector<1x512xf32> to vector<8x512xf32>
    %115 = arith.mulf %112, %114 : vector<8x512xf32>
    %116 = tpu.concatenate %111, %115 in 0 : vector<8x512xf32>, vector<8x512xf32> -> vector<16x512xf32>
    %117 = arith.truncf %116 : vector<16x512xf32> to vector<16x512xbf16>
    %c0_49 = arith.constant 0 : index
    %c0_50 = arith.constant 0 : index
    %118 = vector.load %arg5[%c0_49, %c0_50] : memref<80x512xbf16, #tpu.memory_space<vmem>>, vector<16x512xbf16>
    tpu.vector_store %arg5[%c0_49, %c0_50], %117 {strides = array<i32>} : memref<80x512xbf16, #tpu.memory_space<vmem>>, vector<16x512xbf16>,
    %c15_i32_51 = arith.constant 15 : i32
    %119 = tpu.dynamic_rotate %106 by %c15_i32_51 dim 1 : vector<8x512xf32>, i32 -> vector<8x512xf32>
    %c2_52 = arith.constant 2 : index
    %c0_53 = arith.constant 0 : index
    %120 = vector.load %arg3[%c2_52, %c0_53] : memref<9x512xf32, #tpu.memory_space<vmem>>, vector<1x512xf32>
    %121 = vector.broadcast %120 : vector<1x512xf32> to vector<8x512xf32>
    %122 = arith.mulf %119, %121 : vector<8x512xf32>
    %c1_i32_54 = arith.constant 1 : i32
    %123 = tpu.dynamic_rotate %106 by %c1_i32_54 dim 1 : vector<8x512xf32>, i32 -> vector<8x512xf32>
    %c3_55 = arith.constant 3 : index
    %c0_56 = arith.constant 0 : index
    %124 = vector.load %arg3[%c3_55, %c0_56] : memref<9x512xf32, #tpu.memory_space<vmem>>, vector<1x512xf32>
    %125 = vector.broadcast %124 : vector<1x512xf32> to vector<8x512xf32>
    %126 = arith.mulf %123, %125 : vector<8x512xf32>
    %127 = tpu.concatenate %122, %126 in 0 : vector<8x512xf32>, vector<8x512xf32> -> vector<16x512xf32>
    %128 = arith.truncf %127 : vector<16x512xf32> to vector<16x512xbf16>
    %c16_57 = arith.constant 16 : index
    %c0_58 = arith.constant 0 : index
    %129 = vector.load %arg5[%c16_57, %c0_58] : memref<80x512xbf16, #tpu.memory_space<vmem>>, vector<16x512xbf16>
    tpu.vector_store %arg5[%c16_57, %c0_58], %128 {strides = array<i32>} : memref<80x512xbf16, #tpu.memory_space<vmem>>, vector<16x512xbf16>,
    %c511_i32_59 = arith.constant 511 : i32
    %130 = tpu.dynamic_rotate %106 by %c511_i32_59 dim 1 : vector<8x512xf32>, i32 -> vector<8x512xf32>
    %c5_60 = arith.constant 5 : index
    %c0_61 = arith.constant 0 : index
    %131 = vector.load %arg3[%c5_60, %c0_61] : memref<9x512xf32, #tpu.memory_space<vmem>>, vector<1x512xf32>
    %132 = vector.broadcast %131 : vector<1x512xf32> to vector<8x512xf32>
    %133 = arith.mulf %130, %132 : vector<8x512xf32>
    %134 = tpu.concatenate %106, %133 in 0 : vector<8x512xf32>, vector<8x512xf32> -> vector<16x512xf32>
    %135 = arith.truncf %134 : vector<16x512xf32> to vector<16x512xbf16>
    %c32_62 = arith.constant 32 : index
    %c0_63 = arith.constant 0 : index
    %136 = vector.load %arg5[%c32_62, %c0_63] : memref<80x512xbf16, #tpu.memory_space<vmem>>, vector<16x512xbf16>
    tpu.vector_store %arg5[%c32_62, %c0_63], %135 {strides = array<i32>} : memref<80x512xbf16, #tpu.memory_space<vmem>>, vector<16x512xbf16>,
    %c497_i32_64 = arith.constant 497 : i32
    %137 = tpu.dynamic_rotate %106 by %c497_i32_64 dim 1 : vector<8x512xf32>, i32 -> vector<8x512xf32>
    %c6_65 = arith.constant 6 : index
    %c0_66 = arith.constant 0 : index
    %138 = vector.load %arg3[%c6_65, %c0_66] : memref<9x512xf32, #tpu.memory_space<vmem>>, vector<1x512xf32>
    %139 = vector.broadcast %138 : vector<1x512xf32> to vector<8x512xf32>
    %140 = arith.mulf %137, %139 : vector<8x512xf32>
    %c496_i32_67 = arith.constant 496 : i32
    %141 = tpu.dynamic_rotate %106 by %c496_i32_67 dim 1 : vector<8x512xf32>, i32 -> vector<8x512xf32>
    %c7_68 = arith.constant 7 : index
    %c0_69 = arith.constant 0 : index
    %142 = vector.load %arg3[%c7_68, %c0_69] : memref<9x512xf32, #tpu.memory_space<vmem>>, vector<1x512xf32>
    %143 = vector.broadcast %142 : vector<1x512xf32> to vector<8x512xf32>
    %144 = arith.mulf %141, %143 : vector<8x512xf32>
    %145 = tpu.concatenate %140, %144 in 0 : vector<8x512xf32>, vector<8x512xf32> -> vector<16x512xf32>
    %146 = arith.truncf %145 : vector<16x512xf32> to vector<16x512xbf16>
    %c48_70 = arith.constant 48 : index
    %c0_71 = arith.constant 0 : index
    %147 = vector.load %arg5[%c48_70, %c0_71] : memref<80x512xbf16, #tpu.memory_space<vmem>>, vector<16x512xbf16>
    tpu.vector_store %arg5[%c48_70, %c0_71], %146 {strides = array<i32>} : memref<80x512xbf16, #tpu.memory_space<vmem>>, vector<16x512xbf16>,
    %c495_i32_72 = arith.constant 495 : i32
    %148 = tpu.dynamic_rotate %106 by %c495_i32_72 dim 1 : vector<8x512xf32>, i32 -> vector<8x512xf32>
    %c8_73 = arith.constant 8 : index
    %c0_74 = arith.constant 0 : index
    %149 = vector.load %arg3[%c8_73, %c0_74] : memref<9x512xf32, #tpu.memory_space<vmem>>, vector<1x512xf32>
    %150 = vector.broadcast %149 : vector<1x512xf32> to vector<8x512xf32>
    %151 = arith.mulf %148, %150 : vector<8x512xf32>
    %152 = tpu.concatenate %151, %107 in 0 : vector<8x512xf32>, vector<8x512xf32> -> vector<16x512xf32>
    %153 = arith.truncf %152 : vector<16x512xf32> to vector<16x512xbf16>
    %c64_75 = arith.constant 64 : index
    %c0_76 = arith.constant 0 : index
    %154 = vector.load %arg5[%c64_75, %c0_76] : memref<80x512xbf16, #tpu.memory_space<vmem>>, vector<16x512xbf16>
    tpu.vector_store %arg5[%c64_75, %c0_76], %153 {strides = array<i32>} : memref<80x512xbf16, #tpu.memory_space<vmem>>, vector<16x512xbf16>,
    %c16_77 = arith.constant 16 : index
    %c0_78 = arith.constant 0 : index
    %155 = vector.load %arg1[%c16_77, %c0_78] : memref<24x80xbf16, #tpu.memory_space<vmem>>, vector<8x80xbf16>
    %c0_79 = arith.constant 0 : index
    %c0_80 = arith.constant 0 : index
    %156 = vector.load %arg5[%c0_79, %c0_80] : memref<80x512xbf16, #tpu.memory_space<vmem>>, vector<80x512xbf16>
    %cst_81 = arith.constant dense<0.000000e+00> : vector<8x512xf32>
    %157 = tpu.matmul %155, %156, %cst_81 {dimension_numbers = #tpu.dot_dimension_numbers<[1], [0], [0], [1], [0, 0, 1, 1], [], []>} : vector<8x80xbf16>, vector<80x512xbf16>, vector<8x512xf32> -> vector<8x512xf32>
    %158 = arith.addf %157, %79 : vector<8x512xf32>
    %c0_82 = arith.constant 0 : index
    %c0_83 = arith.constant 0 : index
    %159 = vector.load %arg4[%c0_82, %c0_83] : memref<8x512xf32, #tpu.memory_space<vmem>>, vector<8x512xf32>
    tpu.vector_store %arg4[%c0_82, %c0_83], %158 {strides = array<i32>} : memref<8x512xf32, #tpu.memory_space<vmem>>, vector<8x512xf32>,
    return
  }
}

</mosaic_0001>

<llo_original>
// kernel: tpu_custom_call.1
$region0: #{tpu_custom_call.1}
  #allocation0 [shape = 'u32[]', space=smem, size = 0x4, offset = 0x4, fixed_abs, tag = 'smem constant byte address 0x4 - core index']
  #allocation1 [shape = 'u32[144,128]{1,0:T(1,128)}', space=vmem, size = 0x12000, scoped, tag = 'internal scratch']
  #allocation2 [shape = 'bf16[80,512]{1,0:T(16,128)(2,1)}', space=vmem, size = 0x14000, scoped, tag = 'scratch operand']
  %s0 = inlined_call_operand.hbm [shape: f32[8,512], index: 0, kind: input, shape index: {}]
  %s1 = inlined_call_operand.vmem [shape: bf16[24,80], index: 1, kind: input, shape index: {}]
  %s2 = inlined_call_operand.vmem [shape: f32[8,4], index: 2, kind: input, shape index: {}]
  %s3 = inlined_call_operand.hbm [shape: f32[9,512], index: 3, kind: input, shape index: {}]
  %s4 = inlined_call_operand.hbm [shape: f32[8,512], index: 4, kind: output, shape index: {}]
  %s5 = sld [smem:[#allocation0]]
  $region34: #{tpu_custom_call.1} parent=0
    _
  %s7 = ssub.s32 1, %s5
  %s8 = scalar_select 0, %s7, %s5
  $region1: #{tpu_custom_call.1} parent=0
    #allocation3 [shape = 'u8[16384]{0}', space=vmem, size = 0x4000, scoped, tag = 'input window, operand 0, single buffered']
    #allocation4 [shape = 's32[1]{0}', space=sflag, size = 0x4, scoped, tag = 'scoped memory for tpu_custom_call.1']
    #allocation5 [shape = 's32[1]{0}', space=sflag, size = 0x4, scoped, tag = 'scoped memory for tpu_custom_call.1']
    #allocation6 [shape = 'u8[32768]{0}', space=vmem, size = 0x8000, scoped, tag = 'input window, operand 3, single buffered']
    #allocation7 [shape = 's32[1]{0}', space=sflag, size = 0x4, scoped, tag = 'scoped memory for tpu_custom_call.1']
    #allocation8 [shape = 'u8[16384]{0}', space=vmem, size = 0x4000, scoped, tag = 'output window, operand 0, single buffered']
    %9 = vsyncpa [#allocation4], 0
    %10 = vsyncpa [#allocation7], 0
    %11 = vsyncpa [#allocation5], 0
    // Predicated region
    $region2: #{tpu_custom_call.1} parent=1 // pred_check
      _
    $region3: #{tpu_custom_call.1} parent=1 // pred_check_branch
      %13 = sbr.rel (0) target = $region5
    $region4: #{tpu_custom_call.1} parent=1 // pred_region
      %s15 = ssub.s32 512, 512
      %16 = vsyncadd [#allocation4], %s15
      %s18 = sshll.u32 [#allocation3], 4
      %s19 = int_to_ptr.vmem [resolvable:$true] %s18
      %21 = dma.hbm_to_vmem [thread:$0]  %s0, 512, %s19, [#allocation4]
    $region5: #{tpu_custom_call.1} parent=1 // pred_fallthru
      _
    // Predicated region
    $region6: #{tpu_custom_call.1} parent=1 // pred_check
      _
    $region7: #{tpu_custom_call.1} parent=1 // pred_check_branch
      %23 = sbr.rel (0) target = $region9
    $region8: #{tpu_custom_call.1} parent=1 // pred_region
      _
    $region9: #{tpu_custom_call.1} parent=1 // pred_fallthru
      _
    // Predicated region
    $region10: #{tpu_custom_call.1} parent=1 // pred_check
      _
    $region11: #{tpu_custom_call.1} parent=1 // pred_check_branch
      %25 = sbr.rel (0) target = $region13
    $region12: #{tpu_custom_call.1} parent=1 // pred_region
      _
    $region13: #{tpu_custom_call.1} parent=1 // pred_fallthru
      _
    // Predicated region
    $region14: #{tpu_custom_call.1} parent=1 // pred_check
      _
    $region15: #{tpu_custom_call.1} parent=1 // pred_check_branch
      %27 = sbr.rel (0) target = $region17
    $region16: #{tpu_custom_call.1} parent=1 // pred_region
      %s29 = ssub.s32 1024, 1024
      %30 = vsyncadd [#allocation7], %s29
      %s31 = sshll.u32 [#allocation6], 4
      %s32 = int_to_ptr.vmem [resolvable:$true] %s31
      %37 = dma.hbm_to_vmem [thread:$0]  %s3, 1024, %s32, [#allocation7], 512, 512, 32
    $region17: #{tpu_custom_call.1} parent=1 // pred_fallthru
      _
    // Predicated region
    $region18: #{tpu_custom_call.1} parent=1 // pred_check
      _
    $region19: #{tpu_custom_call.1} parent=1 // pred_check_branch
      %39 = sbr.rel (0) target = $region21
    $region20: #{tpu_custom_call.1} parent=1 // pred_region
      %40 = dma.done [#allocation4], 512
    $region21: #{tpu_custom_call.1} parent=1 // pred_fallthru
      _
    // Predicated region
    $region22: #{tpu_custom_call.1} parent=1 // pred_check
      _
    $region23: #{tpu_custom_call.1} parent=1 // pred_check_branch
      %42 = sbr.rel (0) target = $region25
    $region24: #{tpu_custom_call.1} parent=1 // pred_region
      %43 = dma.done [#allocation7], 1024
    $region25: #{tpu_custom_call.1} parent=1 // pred_fallthru
      _
    %v45 = vld [vmem:[#allocation3] sm:$0xff]
    %v46 = vld [vmem:[#allocation3 + $0x8] sm:$0xff]
    %v47 = vld [vmem:[#allocation3 + $0x10] sm:$0xff]
    %v48 = vld [vmem:[#allocation3 + $0x18] sm:$0xff]
    %v49 = vld [vmem:[%s2] sm:$0xff]
    %v50 = vadd.f32 %v45, %v46
    %v51 = vadd.f32 %v50, %v47
    %v52 = vadd.f32 %v51, %v48
    %53 = vadd.xlane.f32.xlu0 %v52
    %v54 = vpop.xlane.xlu0 %53
    %v55 = vmul.f32 %v45, %v45
    %v56 = vmul.f32 %v46, %v46
    %v57 = vmul.f32 %v47, %v47
    %v58 = vmul.f32 %v48, %v48
    %v59 = vadd.f32 %v55, %v56
    %v60 = vadd.f32 %v59, %v57
    %v61 = vadd.f32 %v60, %v58
    %62 = vadd.xlane.f32.xlu0 %v61
    %v63 = vpop.xlane.xlu0 %62
    %v64 = vrcp.pop 512.0
    %v65 = vmul.f32 %v54, %v64
    %v66 = vmul.f32 %v63, %v64
    %v67 = vmul.f32 %v65, %v65
    %v68 = vsub.f32 %v66, %v67
    %v69 = vmax.f32 %v68, 0.0
    %v70 = vadd.f32 %v69, 1e-05
    %v71 = vrsqrt.pop %v70
    %v72 = vmul.f32 %v49, %v71
    %v73 = vmul.f32 %v65, %v72
    %75 = vrot.lane.b32.xlu0 %v73, 1
    %v76 = vpop.permute.xlu0 %75
    %v78 = vsub.f32 %v49, %v76
    %80 = vset.pattern.permute.xlu0 0
    %81 = vperm.xlu0 %80, %v72
    %v82 = vpop.permute.xlu0 %81
    %v84 = vmul.f32 %v45, %v82
    %v85 = vmul.f32 %v46, %v82
    %v86 = vmul.f32 %v47, %v82
    %v87 = vmul.f32 %v48, %v82
    %89 = vset.pattern.permute.xlu0 1
    %90 = vperm.xlu0 %89, %v78
    %v91 = vpop.permute.xlu0 %90
    %v93 = vadd.f32 %v84, %v91
    %v94 = vadd.f32 %v85, %v91
    %v95 = vadd.f32 %v86, %v91
    %v96 = vadd.f32 %v87, %v91
    %v97 = vmax.f32 %v93, 0.0
    %v98 = vmax.f32 %v94, 0.0
    %v99 = vmax.f32 %v95, 0.0
    %v100 = vmax.f32 %v96, 0.0
    %101 = vrot.lane.b32.xlu0 %v97, 17
    %v102 = vpop.permute.xlu0 %101
    %103 = vrot.lane.b32.xlu0 %v98, 17
    %v104 = vpop.permute.xlu0 %103
    %105 = vrot.lane.b32.xlu0 %v99, 17
    %v106 = vpop.permute.xlu0 %105
    %107 = vrot.lane.b32.xlu0 %v100, 17
    %v108 = vpop.permute.xlu0 %107
    %v109 = vlaneseq
    %v110 = vand.u32 %v109, 127
    %vm111 = vcmp.lt.s32.totalorder %v110, 17
    %v112 = vsel %vm111, %v106, %v108
    %v113 = vsel %vm111, %v104, %v106
    %v114 = vsel %vm111, %v102, %v104
    %v115 = vsel %vm111, %v108, %v102
    %v116 = vld [vmem:[#allocation6] ss:$8 sm:$0xf]
    %v118 = vlaneseq
    %v119 = vshrl.u32 %v118, 7
    %v120 = vsub.s32 0, %v119
    %v121 = vrot.slane %v116, %v120
    %v122 = vlaneseq
    %v123 = vshrl.u32 %v122, 7
    %v124 = vsub.s32 1, %v123
    %v125 = vrot.slane %v116, %v124
    %v126 = vlaneseq
    %v127 = vshrl.u32 %v126, 7
    %v128 = vsub.s32 2, %v127
    %v129 = vrot.slane %v116, %v128
    %v130 = vlaneseq
    %v131 = vshrl.u32 %v130, 7
    %v132 = vsub.s32 3, %v131
    %v133 = vrot.slane %v116, %v132
    %v138 = vmul.f32 %v115, %v121
    %v139 = vmul.f32 %v114, %v125
    %v140 = vmul.f32 %v113, %v129
    %v141 = vmul.f32 %v112, %v133
    %142 = vrot.lane.b32.xlu0 %v97, 16
    %v143 = vpop.permute.xlu0 %142
    %144 = vrot.lane.b32.xlu0 %v98, 16
    %v145 = vpop.permute.xlu0 %144
    %146 = vrot.lane.b32.xlu0 %v99, 16
    %v147 = vpop.permute.xlu0 %146
    %148 = vrot.lane.b32.xlu0 %v100, 16
    %v149 = vpop.permute.xlu0 %148
    %vm150 = vcmp.lt.s32.totalorder %v110, 16
    %v151 = vsel %vm150, %v147, %v149
    %v152 = vsel %vm150, %v145, %v147
    %v153 = vsel %vm150, %v143, %v145
    %v154 = vsel %vm150, %v149, %v143
    %s155 = scalar_lea.vmem [#allocation6], 1
    %v156 = vld [vmem:[%s155] ss:$8 sm:$0xf]
    %v158 = vlaneseq
    %v159 = vshrl.u32 %v158, 7
    %v160 = vsub.s32 0, %v159
    %v161 = vrot.slane %v156, %v160
    %v162 = vlaneseq
    %v163 = vshrl.u32 %v162, 7
    %v164 = vsub.s32 1, %v163
    %v165 = vrot.slane %v156, %v164
    %v166 = vlaneseq
    %v167 = vshrl.u32 %v166, 7
    %v168 = vsub.s32 2, %v167
    %v169 = vrot.slane %v156, %v168
    %v170 = vlaneseq
    %v171 = vshrl.u32 %v170, 7
    %v172 = vsub.s32 3, %v171
    %v173 = vrot.slane %v156, %v172
    %v178 = vmul.f32 %v154, %v161
    %v179 = vmul.f32 %v153, %v165
    %v180 = vmul.f32 %v152, %v169
    %v181 = vmul.f32 %v151, %v173
    %v182 = vpack.c.bf16 %v178, %v138
    %v183 = vpack.c.bf16 %v179, %v139
    %v184 = vpack.c.bf16 %v180, %v140
    %v185 = vpack.c.bf16 %v181, %v141
    %186 = vst [vmem:[#allocation2] sm:$0xff] %v182
    %187 = vst [vmem:[#allocation2 + $0x8] sm:$0xff] %v183
    %188 = vst [vmem:[#allocation2 + $0x10] sm:$0xff] %v184
    %189 = vst [vmem:[#allocation2 + $0x18] sm:$0xff] %v185
    %190 = vrot.lane.b32.xlu0 %v97, 15
    %v191 = vpop.permute.xlu0 %190
    %192 = vrot.lane.b32.xlu0 %v98, 15
    %v193 = vpop.permute.xlu0 %192
    %194 = vrot.lane.b32.xlu0 %v99, 15
    %v195 = vpop.permute.xlu0 %194
    %196 = vrot.lane.b32.xlu0 %v100, 15
    %v197 = vpop.permute.xlu0 %196
    %vm198 = vcmp.lt.s32.totalorder %v110, 15
    %v199 = vsel %vm198, %v195, %v197
    %v200 = vsel %vm198, %v193, %v195
    %v201 = vsel %vm198, %v191, %v193
    %v202 = vsel %vm198, %v197, %v191
    %s203 = scalar_lea.vmem [#allocation6], 2
    %v204 = vld [vmem:[%s203] ss:$8 sm:$0xf]
    %v206 = vlaneseq
    %v207 = vshrl.u32 %v206, 7
    %v208 = vsub.s32 0, %v207
    %v209 = vrot.slane %v204, %v208
    %v210 = vlaneseq
    %v211 = vshrl.u32 %v210, 7
    %v212 = vsub.s32 1, %v211
    %v213 = vrot.slane %v204, %v212
    %v214 = vlaneseq
    %v215 = vshrl.u32 %v214, 7
    %v216 = vsub.s32 2, %v215
    %v217 = vrot.slane %v204, %v216
    %v218 = vlaneseq
    %v219 = vshrl.u32 %v218, 7
    %v220 = vsub.s32 3, %v219
    %v221 = vrot.slane %v204, %v220
    %v226 = vmul.f32 %v202, %v209
    %v227 = vmul.f32 %v201, %v213
    %v228 = vmul.f32 %v200, %v217
    %v229 = vmul.f32 %v199, %v221
    %230 = vrot.lane.b32.xlu0 %v97, 1
    %v231 = vpop.permute.xlu0 %230
    %232 = vrot.lane.b32.xlu0 %v98, 1
    %v233 = vpop.permute.xlu0 %232
    %234 = vrot.lane.b32.xlu0 %v99, 1
    %v235 = vpop.permute.xlu0 %234
    %236 = vrot.lane.b32.xlu0 %v100, 1
    %v237 = vpop.permute.xlu0 %236
    %vm238 = vcmp.lt.s32.totalorder %v110, 1
    %v239 = vsel %vm238, %v235, %v237
    %v240 = vsel %vm238, %v233, %v235
    %v241 = vsel %vm238, %v231, %v233
    %v242 = vsel %vm238, %v237, %v231
    %s243 = scalar_lea.vmem [#allocation6], 3
    %v244 = vld [vmem:[%s243] ss:$8 sm:$0xf]
    %v246 = vlaneseq
    %v247 = vshrl.u32 %v246, 7
    %v248 = vsub.s32 0, %v247
    %v249 = vrot.slane %v244, %v248
    %v250 = vlaneseq
    %v251 = vshrl.u32 %v250, 7
    %v252 = vsub.s32 1, %v251
    %v253 = vrot.slane %v244, %v252
    %v254 = vlaneseq
    %v255 = vshrl.u32 %v254, 7
    %v256 = vsub.s32 2, %v255
    %v257 = vrot.slane %v244, %v256
    %v258 = vlaneseq
    %v259 = vshrl.u32 %v258, 7
    %v260 = vsub.s32 3, %v259
    %v261 = vrot.slane %v244, %v260
    %v266 = vmul.f32 %v242, %v249
    %v267 = vmul.f32 %v241, %v253
    %v268 = vmul.f32 %v240, %v257
    %v269 = vmul.f32 %v239, %v261
    %v270 = vpack.c.bf16 %v266, %v226
    %v271 = vpack.c.bf16 %v267, %v227
    %v272 = vpack.c.bf16 %v268, %v228
    %v273 = vpack.c.bf16 %v269, %v229
    %274 = vst [vmem:[#allocation2 + $0x20] sm:$0xff] %v270
    %275 = vst [vmem:[#allocation2 + $0x28] sm:$0xff] %v271
    %276 = vst [vmem:[#allocation2 + $0x30] sm:$0xff] %v272
    %277 = vst [vmem:[#allocation2 + $0x38] sm:$0xff] %v273
    %278 = vrot.lane.b32.xlu0 %v97, 127
    %v279 = vpop.permute.xlu0 %278
    %280 = vrot.lane.b32.xlu0 %v98, 127
    %v281 = vpop.permute.xlu0 %280
    %282 = vrot.lane.b32.xlu0 %v99, 127
    %v283 = vpop.permute.xlu0 %282
    %284 = vrot.lane.b32.xlu0 %v100, 127
    %v285 = vpop.permute.xlu0 %284
    %vm286 = vcmp.lt.s32.totalorder %v110, 127
    %v287 = vsel %vm286, %v283, %v285
    %v288 = vsel %vm286, %v281, %v283
    %v289 = vsel %vm286, %v279, %v281
    %v290 = vsel %vm286, %v285, %v279
    %s291 = scalar_lea.vmem [#allocation6], 5
    %v292 = vld [vmem:[%s291] ss:$8 sm:$0xf]
    %v294 = vlaneseq
    %v295 = vshrl.u32 %v294, 7
    %v296 = vsub.s32 0, %v295
    %v297 = vrot.slane %v292, %v296
    %v298 = vlaneseq
    %v299 = vshrl.u32 %v298, 7
    %v300 = vsub.s32 1, %v299
    %v301 = vrot.slane %v292, %v300
    %v302 = vlaneseq
    %v303 = vshrl.u32 %v302, 7
    %v304 = vsub.s32 2, %v303
    %v305 = vrot.slane %v292, %v304
    %v306 = vlaneseq
    %v307 = vshrl.u32 %v306, 7
    %v308 = vsub.s32 3, %v307
    %v309 = vrot.slane %v292, %v308
    %v314 = vmul.f32 %v289, %v297
    %v315 = vmul.f32 %v288, %v301
    %v316 = vmul.f32 %v287, %v305
    %v317 = vmul.f32 %v290, %v309
    %v318 = vpack.c.bf16 %v314, %v97
    %v319 = vpack.c.bf16 %v315, %v98
    %v320 = vpack.c.bf16 %v316, %v99
    %v321 = vpack.c.bf16 %v317, %v100
    %322 = vst [vmem:[#allocation2 + $0x40] sm:$0xff] %v318
    %323 = vst [vmem:[#allocation2 + $0x48] sm:$0xff] %v319
    %324 = vst [vmem:[#allocation2 + $0x50] sm:$0xff] %v320
    %325 = vst [vmem:[#allocation2 + $0x58] sm:$0xff] %v321
    %326 = vrot.lane.b32.xlu0 %v97, 113
    %v327 = vpop.permute.xlu0 %326
    %328 = vrot.lane.b32.xlu0 %v98, 113
    %v329 = vpop.permute.xlu0 %328
    %330 = vrot.lane.b32.xlu0 %v99, 113
    %v331 = vpop.permute.xlu0 %330
    %332 = vrot.lane.b32.xlu0 %v100, 113
    %v333 = vpop.permute.xlu0 %332
    %vm334 = vcmp.lt.s32.totalorder %v110, 113
    %v335 = vsel %vm334, %v331, %v333
    %v336 = vsel %vm334, %v329, %v331
    %v337 = vsel %vm334, %v327, %v329
    %v338 = vsel %vm334, %v333, %v327
    %s339 = scalar_lea.vmem [#allocation6], 6
    %v340 = vld [vmem:[%s339] ss:$8 sm:$0xf]
    %v342 = vlaneseq
    %v343 = vshrl.u32 %v342, 7
    %v344 = vsub.s32 0, %v343
    %v345 = vrot.slane %v340, %v344
    %v346 = vlaneseq
    %v347 = vshrl.u32 %v346, 7
    %v348 = vsub.s32 1, %v347
    %v349 = vrot.slane %v340, %v348
    %v350 = vlaneseq
    %v351 = vshrl.u32 %v350, 7
    %v352 = vsub.s32 2, %v351
    %v353 = vrot.slane %v340, %v352
    %v354 = vlaneseq
    %v355 = vshrl.u32 %v354, 7
    %v356 = vsub.s32 3, %v355
    %v357 = vrot.slane %v340, %v356
    %v362 = vmul.f32 %v337, %v345
    %v363 = vmul.f32 %v336, %v349
    %v364 = vmul.f32 %v335, %v353
    %v365 = vmul.f32 %v338, %v357
    %366 = vrot.lane.b32.xlu0 %v97, 112
    %v367 = vpop.permute.xlu0 %366
    %368 = vrot.lane.b32.xlu0 %v98, 112
    %v369 = vpop.permute.xlu0 %368
    %370 = vrot.lane.b32.xlu0 %v99, 112
    %v371 = vpop.permute.xlu0 %370
    %372 = vrot.lane.b32.xlu0 %v100, 112
    %v373 = vpop.permute.xlu0 %372
    %vm374 = vcmp.lt.s32.totalorder %v110, 112
    %v375 = vsel %vm374, %v371, %v373
    %v376 = vsel %vm374, %v369, %v371
    %v377 = vsel %vm374, %v367, %v369
    %v378 = vsel %vm374, %v373, %v367
    %s379 = scalar_lea.vmem [#allocation6], 7
    %v380 = vld [vmem:[%s379] ss:$8 sm:$0xf]
    %v382 = vlaneseq
    %v383 = vshrl.u32 %v382, 7
    %v384 = vsub.s32 0, %v383
    %v385 = vrot.slane %v380, %v384
    %v386 = vlaneseq
    %v387 = vshrl.u32 %v386, 7
    %v388 = vsub.s32 1, %v387
    %v389 = vrot.slane %v380, %v388
    %v390 = vlaneseq
    %v391 = vshrl.u32 %v390, 7
    %v392 = vsub.s32 2, %v391
    %v393 = vrot.slane %v380, %v392
    %v394 = vlaneseq
    %v395 = vshrl.u32 %v394, 7
    %v396 = vsub.s32 3, %v395
    %v397 = vrot.slane %v380, %v396
    %v402 = vmul.f32 %v377, %v385
    %v403 = vmul.f32 %v376, %v389
    %v404 = vmul.f32 %v375, %v393
    %v405 = vmul.f32 %v378, %v397
    %v406 = vpack.c.bf16 %v402, %v362
    %v407 = vpack.c.bf16 %v403, %v363
    %v408 = vpack.c.bf16 %v404, %v364
    %v409 = vpack.c.bf16 %v405, %v365
    %410 = vst [vmem:[#allocation2 + $0x60] sm:$0xff] %v406
    %411 = vst [vmem:[#allocation2 + $0x68] sm:$0xff] %v407
    %412 = vst [vmem:[#allocation2 + $0x70] sm:$0xff] %v408
    %413 = vst [vmem:[#allocation2 + $0x78] sm:$0xff] %v409
    %414 = vrot.lane.b32.xlu0 %v97, 111
    %v415 = vpop.permute.xlu0 %414
    %416 = vrot.lane.b32.xlu0 %v98, 111
    %v417 = vpop.permute.xlu0 %416
    %418 = vrot.lane.b32.xlu0 %v99, 111
    %v419 = vpop.permute.xlu0 %418
    %420 = vrot.lane.b32.xlu0 %v100, 111
    %v421 = vpop.permute.xlu0 %420
    %vm422 = vcmp.lt.s32.totalorder %v110, 111
    %v423 = vsel %vm422, %v419, %v421
    %v424 = vsel %vm422, %v417, %v419
    %v425 = vsel %vm422, %v415, %v417
    %v426 = vsel %vm422, %v421, %v415
    %s427 = scalar_lea.vmem [#allocation6], 32
    %v428 = vld [vmem:[%s427] ss:$8 sm:$0xf]
    %v430 = vlaneseq
    %v431 = vshrl.u32 %v430, 7
    %v432 = vsub.s32 0, %v431
    %v433 = vrot.slane %v428, %v432
    %v434 = vlaneseq
    %v435 = vshrl.u32 %v434, 7
    %v436 = vsub.s32 1, %v435
    %v437 = vrot.slane %v428, %v436
    %v438 = vlaneseq
    %v439 = vshrl.u32 %v438, 7
    %v440 = vsub.s32 2, %v439
    %v441 = vrot.slane %v428, %v440
    %v442 = vlaneseq
    %v443 = vshrl.u32 %v442, 7
    %v444 = vsub.s32 3, %v443
    %v445 = vrot.slane %v428, %v444
    %v450 = vmul.f32 %v425, %v433
    %v451 = vmul.f32 %v424, %v437
    %v452 = vmul.f32 %v423, %v441
    %v453 = vmul.f32 %v426, %v445
    %v454 = vpack.c.bf16 %v45, %v450
    %v455 = vpack.c.bf16 %v46, %v451
    %v456 = vpack.c.bf16 %v47, %v452
    %v457 = vpack.c.bf16 %v48, %v453
    %458 = vst [vmem:[#allocation2 + $0x80] sm:$0xff] %v454
    %459 = vst [vmem:[#allocation2 + $0x88] sm:$0xff] %v455
    %460 = vst [vmem:[#allocation2 + $0x90] sm:$0xff] %v456
    %461 = vst [vmem:[#allocation2 + $0x98] sm:$0xff] %v457
    %v462 = vld [vmem:[%s1] sm:$0xf]
    %v463 = vld [vmem:[%s1 + $0x4] sm:$0xf]
    %v464 = vld [vmem:[#allocation2] sm:$0xff]
    %v465 = vld [vmem:[#allocation2 + $0x8] sm:$0xff]
    %v466 = vld [vmem:[#allocation2 + $0x10] sm:$0xff]
    %v467 = vld [vmem:[#allocation2 + $0x18] sm:$0xff]
    %v468 = vld [vmem:[#allocation2 + $0x20] sm:$0xff]
    %v469 = vld [vmem:[#allocation2 + $0x28] sm:$0xff]
    %v470 = vld [vmem:[#allocation2 + $0x30] sm:$0xff]
    %v471 = vld [vmem:[#allocation2 + $0x38] sm:$0xff]
    %v472 = vld [vmem:[#allocation2 + $0x40] sm:$0xff]
    %v473 = vld [vmem:[#allocation2 + $0x48] sm:$0xff]
    %v474 = vld [vmem:[#allocation2 + $0x50] sm:$0xff]
    %v475 = vld [vmem:[#allocation2 + $0x58] sm:$0xff]
    %v476 = vld [vmem:[#allocation2 + $0x60] sm:$0xff]
    %v477 = vld [vmem:[#allocation2 + $0x68] sm:$0xff]
    %v478 = vld [vmem:[#allocation2 + $0x70] sm:$0xff]
    %v479 = vld [vmem:[#allocation2 + $0x78] sm:$0xff]
    %v480 = vld [vmem:[#allocation2 + $0x80] sm:$0xff]
    %v481 = vld [vmem:[#allocation2 + $0x88] sm:$0xff]
    %v482 = vld [vmem:[#allocation2 + $0x90] sm:$0xff]
    %v483 = vld [vmem:[#allocation2 + $0x98] sm:$0xff]
    %v486 = vunpack.c.l.b16 %v462
    %v487 = vunpack.c.l.b16 %v463
    %v488 = vpack.c.b16 %v487, %v486
    %vm489 = vcmask 654336
    %v491 = vsel %vm489, %v488, 0
    %493 = vmatprep.subr.bf16.mxu0 %v465
    %494 = vmatpush1.bf16.msra.mxu0 %v464
    %495 = vmatprep.subr.bf16.mxu0 %v469
    %496 = vmatpush1.bf16.msra.mxu0 %v468
    %497 = vmatprep.subr.bf16.mxu0 %v473
    %498 = vmatpush1.bf16.msra.mxu0 %v472
    %499 = vmatprep.subr.bf16.mxu0 %v477
    %500 = vmatpush1.bf16.msra.mxu0 %v476
    %501 = vmatprep.subr.bf16.mxu0 %v481
    %502 = vmatpush1.bf16.msra.mxu0 %v480
    %503 = vmatprep.subr.bf16.mxu0 0
    %504 = vmatpush1.bf16.msra.mxu0 0
    %505 = vmatprep.subr.bf16.mxu0 0
    %506 = vmatpush1.bf16.msra.mxu0 0
    %507 = vmatprep.subr.bf16.mxu0 0
    %508 = vmatpush1.bf16.msra.mxu0 0
    %509 = vmatprep.subr.bf16.mxu0 0
    %510 = vmatpush1.bf16.msra.mxu0 0
    %511 = vmatprep.subr.bf16.mxu0 0
    %512 = vmatpush1.bf16.msra.mxu0 0
    %513 = vmatprep.subr.bf16.mxu0 0
    %514 = vmatpush1.bf16.msra.mxu0 0
    %515 = vmatprep.subr.bf16.mxu0 0
    %516 = vmatpush1.bf16.msra.mxu0 0
    %517 = vmatprep.subr.bf16.mxu0 0
    %518 = vmatpush1.bf16.msra.mxu0 0
    %519 = vmatprep.subr.bf16.mxu0 0
    %520 = vmatpush1.bf16.msra.mxu0 0
    %521 = vmatprep.subr.bf16.mxu0 0
    %522 = vmatpush1.bf16.msra.mxu0 0
    %523 = vmatprep.subr.bf16.mxu0 0
    %524 = vmatpush1.bf16.msra.mxu0 0
    %525 = vmatprep.mubr.bf16.mxu0 0
    %526 = vmatmul.mubr.bf16.gmra.mrb[0].mxu0 %v491
    %v527 = vpop.f32.mrb[0].mxu0
    %v528 = vadd.f32 0.0, %v527
    %v529 = vpop.f32.mrb[0].mxu0
    %v530 = vadd.f32 0.0, %v529
    %v531 = vpop.f32.mrb[0].mxu0
    %v532 = vadd.f32 0.0, %v531
    %v533 = vpop.f32.mrb[0].mxu0
    %v534 = vadd.f32 0.0, %v533
    %535 = vdwg.mxu0
    %536 = vmatprep.subr.bf16.mxu0 %v467
    %537 = vmatpush1.bf16.msra.mxu0 %v466
    %538 = vmatprep.subr.bf16.mxu0 %v471
    %539 = vmatpush1.bf16.msra.mxu0 %v470
    %540 = vmatprep.subr.bf16.mxu0 %v475
    %541 = vmatpush1.bf16.msra.mxu0 %v474
    %542 = vmatprep.subr.bf16.mxu0 %v479
    %543 = vmatpush1.bf16.msra.mxu0 %v478
    %544 = vmatprep.subr.bf16.mxu0 %v483
    %545 = vmatpush1.bf16.msra.mxu0 %v482
    %546 = vmatprep.subr.bf16.mxu0 0
    %547 = vmatpush1.bf16.msra.mxu0 0
    %548 = vmatprep.subr.bf16.mxu0 0
    %549 = vmatpush1.bf16.msra.mxu0 0
    %550 = vmatprep.subr.bf16.mxu0 0
    %551 = vmatpush1.bf16.msra.mxu0 0
    %552 = vmatprep.subr.bf16.mxu0 0
    %553 = vmatpush1.bf16.msra.mxu0 0
    %554 = vmatprep.subr.bf16.mxu0 0
    %555 = vmatpush1.bf16.msra.mxu0 0
    %556 = vmatprep.subr.bf16.mxu0 0
    %557 = vmatpush1.bf16.msra.mxu0 0
    %558 = vmatprep.subr.bf16.mxu0 0
    %559 = vmatpush1.bf16.msra.mxu0 0
    %560 = vmatprep.subr.bf16.mxu0 0
    %561 = vmatpush1.bf16.msra.mxu0 0
    %562 = vmatprep.subr.bf16.mxu0 0
    %563 = vmatpush1.bf16.msra.mxu0 0
    %564 = vmatprep.subr.bf16.mxu0 0
    %565 = vmatpush1.bf16.msra.mxu0 0
    %566 = vmatprep.subr.bf16.mxu0 0
    %567 = vmatpush1.bf16.msra.mxu0 0
    %568 = vmatprep.mubr.bf16.mxu0 0
    %569 = vmatmul.mubr.bf16.gmra.mrb[0].mxu0 %v491
    %v570 = vpop.f32.mrb[0].mxu0
    %v571 = vadd.f32 0.0, %v570
    %v572 = vpop.f32.mrb[0].mxu0
    %v573 = vadd.f32 0.0, %v572
    %v574 = vpop.f32.mrb[0].mxu0
    %v575 = vadd.f32 0.0, %v574
    %v576 = vpop.f32.mrb[0].mxu0
    %v577 = vadd.f32 0.0, %v576
    %578 = vdwg.mxu0
    %v579 = vld [vmem:[%s2] sm:$0xff]
    %v580 = vadd.f32 %v528, %v530
    %v581 = vadd.f32 %v580, %v571
    %v582 = vadd.f32 %v581, %v573
    %583 = vadd.xlane.f32.xlu0 %v582
    %v584 = vpop.xlane.xlu0 %583
    %v585 = vmul.f32 %v528, %v528
    %v586 = vmul.f32 %v530, %v530
    %v587 = vmul.f32 %v571, %v571
    %v588 = vmul.f32 %v573, %v573
    %v589 = vadd.f32 %v585, %v586
    %v590 = vadd.f32 %v589, %v587
    %v591 = vadd.f32 %v590, %v588
    %592 = vadd.xlane.f32.xlu0 %v591
    %v593 = vpop.xlane.xlu0 %592
    %v594 = vmul.f32 %v584, %v64
    %v595 = vmul.f32 %v593, %v64
    %v596 = vmul.f32 %v594, %v594
    %v597 = vsub.f32 %v595, %v596
    %v598 = vmax.f32 %v597, 0.0
    %v599 = vadd.f32 %v598, 1e-05
    %v600 = vrsqrt.pop %v599
    %v601 = vmul.f32 %v579, %v600
    %v602 = vmul.f32 %v594, %v601
    %604 = vrot.lane.b32.xlu0 %v602, 1
    %v605 = vpop.permute.xlu0 %604
    %v607 = vsub.f32 %v579, %v605
    %609 = vset.pattern.permute.xlu0 2
    %610 = vperm.xlu0 %609, %v601
    %v611 = vpop.permute.xlu0 %610
    %v613 = vmul.f32 %v528, %v611
    %v614 = vmul.f32 %v530, %v611
    %v615 = vmul.f32 %v571, %v611
    %v616 = vmul.f32 %v573, %v611
    %618 = vset.pattern.permute.xlu0 3
    %619 = vperm.xlu0 %618, %v607
    %v620 = vpop.permute.xlu0 %619
    %v622 = vadd.f32 %v613, %v620
    %v623 = vadd.f32 %v614, %v620
    %v624 = vadd.f32 %v615, %v620
    %v625 = vadd.f32 %v616, %v620
    %v626 = vmax.f32 %v622, 0.0
    %v627 = vmax.f32 %v623, 0.0
    %v628 = vmax.f32 %v624, 0.0
    %v629 = vmax.f32 %v625, 0.0
    %630 = vrot.lane.b32.xlu0 %v626, 17
    %v631 = vpop.permute.xlu0 %630
    %632 = vrot.lane.b32.xlu0 %v627, 17
    %v633 = vpop.permute.xlu0 %632
    %634 = vrot.lane.b32.xlu0 %v628, 17
    %v635 = vpop.permute.xlu0 %634
    %636 = vrot.lane.b32.xlu0 %v629, 17
    %v637 = vpop.permute.xlu0 %636
    %v638 = vsel %vm111, %v635, %v637
    %v639 = vsel %vm111, %v633, %v635
    %v640 = vsel %vm111, %v631, %v633
    %v641 = vsel %vm111, %v637, %v631
    %v642 = vld [vmem:[#allocation6] ss:$8 sm:$0xf]
    %v644 = vlaneseq
    %v645 = vshrl.u32 %v644, 7
    %v646 = vsub.s32 0, %v645
    %v647 = vrot.slane %v642, %v646
    %v648 = vlaneseq
    %v649 = vshrl.u32 %v648, 7
    %v650 = vsub.s32 1, %v649
    %v651 = vrot.slane %v642, %v650
    %v652 = vlaneseq
    %v653 = vshrl.u32 %v652, 7
    %v654 = vsub.s32 2, %v653
    %v655 = vrot.slane %v642, %v654
    %v656 = vlaneseq
    %v657 = vshrl.u32 %v656, 7
    %v658 = vsub.s32 3, %v657
    %v659 = vrot.slane %v642, %v658
    %v664 = vmul.f32 %v641, %v647
    %v665 = vmul.f32 %v640, %v651
    %v666 = vmul.f32 %v639, %v655
    %v667 = vmul.f32 %v638, %v659
    %668 = vrot.lane.b32.xlu0 %v626, 16
    %v669 = vpop.permute.xlu0 %668
    %670 = vrot.lane.b32.xlu0 %v627, 16
    %v671 = vpop.permute.xlu0 %670
    %672 = vrot.lane.b32.xlu0 %v628, 16
    %v673 = vpop.permute.xlu0 %672
    %674 = vrot.lane.b32.xlu0 %v629, 16
    %v675 = vpop.permute.xlu0 %674
    %v676 = vsel %vm150, %v673, %v675
    %v677 = vsel %vm150, %v671, %v673
    %v678 = vsel %vm150, %v669, %v671
    %v679 = vsel %vm150, %v675, %v669
    %v680 = vld [vmem:[%s155] ss:$8 sm:$0xf]
    %v682 = vlaneseq
    %v683 = vshrl.u32 %v682, 7
    %v684 = vsub.s32 0, %v683
    %v685 = vrot.slane %v680, %v684
    %v686 = vlaneseq
    %v687 = vshrl.u32 %v686, 7
    %v688 = vsub.s32 1, %v687
    %v689 = vrot.slane %v680, %v688
    %v690 = vlaneseq
    %v691 = vshrl.u32 %v690, 7
    %v692 = vsub.s32 2, %v691
    %v693 = vrot.slane %v680, %v692
    %v694 = vlaneseq
    %v695 = vshrl.u32 %v694, 7
    %v696 = vsub.s32 3, %v695
    %v697 = vrot.slane %v680, %v696
    %v702 = vmul.f32 %v679, %v685
    %v703 = vmul.f32 %v678, %v689
    %v704 = vmul.f32 %v677, %v693
    %v705 = vmul.f32 %v676, %v697
    %v706 = vpack.c.bf16 %v702, %v664
    %v707 = vpack.c.bf16 %v703, %v665
    %v708 = vpack.c.bf16 %v704, %v666
    %v709 = vpack.c.bf16 %v705, %v667
    %710 = vst [vmem:[#allocation2] sm:$0xff] %v706
    %711 = vst [vmem:[#allocation2 + $0x8] sm:$0xff] %v707
    %712 = vst [vmem:[#allocation2 + $0x10] sm:$0xff] %v708
    %713 = vst [vmem:[#allocation2 + $0x18] sm:$0xff] %v709
    %714 = vrot.lane.b32.xlu0 %v626, 15
    %v715 = vpop.permute.xlu0 %714
    %716 = vrot.lane.b32.xlu0 %v627, 15
    %v717 = vpop.permute.xlu0 %716
    %718 = vrot.lane.b32.xlu0 %v628, 15
    %v719 = vpop.permute.xlu0 %718
    %720 = vrot.lane.b32.xlu0 %v629, 15
    %v721 = vpop.permute.xlu0 %720
    %v722 = vsel %vm198, %v719, %v721
    %v723 = vsel %vm198, %v717, %v719
    %v724 = vsel %vm198, %v715, %v717
    %v725 = vsel %vm198, %v721, %v715
    %v726 = vld [vmem:[%s203] ss:$8 sm:$0xf]
    %v728 = vlaneseq
    %v729 = vshrl.u32 %v728, 7
    %v730 = vsub.s32 0, %v729
    %v731 = vrot.slane %v726, %v730
    %v732 = vlaneseq
    %v733 = vshrl.u32 %v732, 7
    %v734 = vsub.s32 1, %v733
    %v735 = vrot.slane %v726, %v734
    %v736 = vlaneseq
    %v737 = vshrl.u32 %v736, 7
    %v738 = vsub.s32 2, %v737
    %v739 = vrot.slane %v726, %v738
    %v740 = vlaneseq
    %v741 = vshrl.u32 %v740, 7
    %v742 = vsub.s32 3, %v741
    %v743 = vrot.slane %v726, %v742
    %v748 = vmul.f32 %v725, %v731
    %v749 = vmul.f32 %v724, %v735
    %v750 = vmul.f32 %v723, %v739
    %v751 = vmul.f32 %v722, %v743
    %752 = vrot.lane.b32.xlu0 %v626, 1
    %v753 = vpop.permute.xlu0 %752
    %754 = vrot.lane.b32.xlu0 %v627, 1
    %v755 = vpop.permute.xlu0 %754
    %756 = vrot.lane.b32.xlu0 %v628, 1
    %v757 = vpop.permute.xlu0 %756
    %758 = vrot.lane.b32.xlu0 %v629, 1
    %v759 = vpop.permute.xlu0 %758
    %v760 = vsel %vm238, %v757, %v759
    %v761 = vsel %vm238, %v755, %v757
    %v762 = vsel %vm238, %v753, %v755
    %v763 = vsel %vm238, %v759, %v753
    %v764 = vld [vmem:[%s243] ss:$8 sm:$0xf]
    %v766 = vlaneseq
    %v767 = vshrl.u32 %v766, 7
    %v768 = vsub.s32 0, %v767
    %v769 = vrot.slane %v764, %v768
    %v770 = vlaneseq
    %v771 = vshrl.u32 %v770, 7
    %v772 = vsub.s32 1, %v771
    %v773 = vrot.slane %v764, %v772
    %v774 = vlaneseq
    %v775 = vshrl.u32 %v774, 7
    %v776 = vsub.s32 2, %v775
    %v777 = vrot.slane %v764, %v776
    %v778 = vlaneseq
    %v779 = vshrl.u32 %v778, 7
    %v780 = vsub.s32 3, %v779
    %v781 = vrot.slane %v764, %v780
    %v786 = vmul.f32 %v763, %v769
    %v787 = vmul.f32 %v762, %v773
    %v788 = vmul.f32 %v761, %v777
    %v789 = vmul.f32 %v760, %v781
    %v790 = vpack.c.bf16 %v786, %v748
    %v791 = vpack.c.bf16 %v787, %v749
    %v792 = vpack.c.bf16 %v788, %v750
    %v793 = vpack.c.bf16 %v789, %v751
    %794 = vst [vmem:[#allocation2 + $0x20] sm:$0xff] %v790
    %795 = vst [vmem:[#allocation2 + $0x28] sm:$0xff] %v791
    %796 = vst [vmem:[#allocation2 + $0x30] sm:$0xff] %v792
    %797 = vst [vmem:[#allocation2 + $0x38] sm:$0xff] %v793
    %798 = vrot.lane.b32.xlu0 %v626, 127
    %v799 = vpop.permute.xlu0 %798
    %800 = vrot.lane.b32.xlu0 %v627, 127
    %v801 = vpop.permute.xlu0 %800
    %802 = vrot.lane.b32.xlu0 %v628, 127
    %v803 = vpop.permute.xlu0 %802
    %804 = vrot.lane.b32.xlu0 %v629, 127
    %v805 = vpop.permute.xlu0 %804
    %v806 = vsel %vm286, %v803, %v805
    %v807 = vsel %vm286, %v801, %v803
    %v808 = vsel %vm286, %v799, %v801
    %v809 = vsel %vm286, %v805, %v799
    %v810 = vld [vmem:[%s291] ss:$8 sm:$0xf]
    %v812 = vlaneseq
    %v813 = vshrl.u32 %v812, 7
    %v814 = vsub.s32 0, %v813
    %v815 = vrot.slane %v810, %v814
    %v816 = vlaneseq
    %v817 = vshrl.u32 %v816, 7
    %v818 = vsub.s32 1, %v817
    %v819 = vrot.slane %v810, %v818
    %v820 = vlaneseq
    %v821 = vshrl.u32 %v820, 7
    %v822 = vsub.s32 2, %v821
    %v823 = vrot.slane %v810, %v822
    %v824 = vlaneseq
    %v825 = vshrl.u32 %v824, 7
    %v826 = vsub.s32 3, %v825
    %v827 = vrot.slane %v810, %v826
    %v832 = vmul.f32 %v808, %v815
    %v833 = vmul.f32 %v807, %v819
    %v834 = vmul.f32 %v806, %v823
    %v835 = vmul.f32 %v809, %v827
    %v836 = vpack.c.bf16 %v832, %v626
    %v837 = vpack.c.bf16 %v833, %v627
    %v838 = vpack.c.bf16 %v834, %v628
    %v839 = vpack.c.bf16 %v835, %v629
    %840 = vst [vmem:[#allocation2 + $0x40] sm:$0xff] %v836
    %841 = vst [vmem:[#allocation2 + $0x48] sm:$0xff] %v837
    %842 = vst [vmem:[#allocation2 + $0x50] sm:$0xff] %v838
    %843 = vst [vmem:[#allocation2 + $0x58] sm:$0xff] %v839
    %844 = vrot.lane.b32.xlu0 %v626, 113
    %v845 = vpop.permute.xlu0 %844
    %846 = vrot.lane.b32.xlu0 %v627, 113
    %v847 = vpop.permute.xlu0 %846
    %848 = vrot.lane.b32.xlu0 %v628, 113
    %v849 = vpop.permute.xlu0 %848
    %850 = vrot.lane.b32.xlu0 %v629, 113
    %v851 = vpop.permute.xlu0 %850
    %v852 = vsel %vm334, %v849, %v851
    %v853 = vsel %vm334, %v847, %v849
    %v854 = vsel %vm334, %v845, %v847
    %v855 = vsel %vm334, %v851, %v845
    %v856 = vld [vmem:[%s339] ss:$8 sm:$0xf]
    %v858 = vlaneseq
    %v859 = vshrl.u32 %v858, 7
    %v860 = vsub.s32 0, %v859
    %v861 = vrot.slane %v856, %v860
    %v862 = vlaneseq
    %v863 = vshrl.u32 %v862, 7
    %v864 = vsub.s32 1, %v863
    %v865 = vrot.slane %v856, %v864
    %v866 = vlaneseq
    %v867 = vshrl.u32 %v866, 7
    %v868 = vsub.s32 2, %v867
    %v869 = vrot.slane %v856, %v868
    %v870 = vlaneseq
    %v871 = vshrl.u32 %v870, 7
    %v872 = vsub.s32 3, %v871
    %v873 = vrot.slane %v856, %v872
    %v878 = vmul.f32 %v854, %v861
    %v879 = vmul.f32 %v853, %v865
    %v880 = vmul.f32 %v852, %v869
    %v881 = vmul.f32 %v855, %v873
    %882 = vrot.lane.b32.xlu0 %v626, 112
    %v883 = vpop.permute.xlu0 %882
    %884 = vrot.lane.b32.xlu0 %v627, 112
    %v885 = vpop.permute.xlu0 %884
    %886 = vrot.lane.b32.xlu0 %v628, 112
    %v887 = vpop.permute.xlu0 %886
    %888 = vrot.lane.b32.xlu0 %v629, 112
    %v889 = vpop.permute.xlu0 %888
    %v890 = vsel %vm374, %v887, %v889
    %v891 = vsel %vm374, %v885, %v887
    %v892 = vsel %vm374, %v883, %v885
    %v893 = vsel %vm374, %v889, %v883
    %v894 = vld [vmem:[%s379] ss:$8 sm:$0xf]
    %v896 = vlaneseq
    %v897 = vshrl.u32 %v896, 7
    %v898 = vsub.s32 0, %v897
    %v899 = vrot.slane %v894, %v898
    %v900 = vlaneseq
    %v901 = vshrl.u32 %v900, 7
    %v902 = vsub.s32 1, %v901
    %v903 = vrot.slane %v894, %v902
    %v904 = vlaneseq
    %v905 = vshrl.u32 %v904, 7
    %v906 = vsub.s32 2, %v905
    %v907 = vrot.slane %v894, %v906
    %v908 = vlaneseq
    %v909 = vshrl.u32 %v908, 7
    %v910 = vsub.s32 3, %v909
    %v911 = vrot.slane %v894, %v910
    %v916 = vmul.f32 %v892, %v899
    %v917 = vmul.f32 %v891, %v903
    %v918 = vmul.f32 %v890, %v907
    %v919 = vmul.f32 %v893, %v911
    %v920 = vpack.c.bf16 %v916, %v878
    %v921 = vpack.c.bf16 %v917, %v879
    %v922 = vpack.c.bf16 %v918, %v880
    %v923 = vpack.c.bf16 %v919, %v881
    %924 = vst [vmem:[#allocation2 + $0x60] sm:$0xff] %v920
    %925 = vst [vmem:[#allocation2 + $0x68] sm:$0xff] %v921
    %926 = vst [vmem:[#allocation2 + $0x70] sm:$0xff] %v922
    %927 = vst [vmem:[#allocation2 + $0x78] sm:$0xff] %v923
    %928 = vrot.lane.b32.xlu0 %v626, 111
    %v929 = vpop.permute.xlu0 %928
    %930 = vrot.lane.b32.xlu0 %v627, 111
    %v931 = vpop.permute.xlu0 %930
    %932 = vrot.lane.b32.xlu0 %v628, 111
    %v933 = vpop.permute.xlu0 %932
    %934 = vrot.lane.b32.xlu0 %v629, 111
    %v935 = vpop.permute.xlu0 %934
    %v936 = vsel %vm422, %v933, %v935
    %v937 = vsel %vm422, %v931, %v933
    %v938 = vsel %vm422, %v929, %v931
    %v939 = vsel %vm422, %v935, %v929
    %v940 = vld [vmem:[%s427] ss:$8 sm:$0xf]
    %v942 = vlaneseq
    %v943 = vshrl.u32 %v942, 7
    %v944 = vsub.s32 0, %v943
    %v945 = vrot.slane %v940, %v944
    %v946 = vlaneseq
    %v947 = vshrl.u32 %v946, 7
    %v948 = vsub.s32 1, %v947
    %v949 = vrot.slane %v940, %v948
    %v950 = vlaneseq
    %v951 = vshrl.u32 %v950, 7
    %v952 = vsub.s32 2, %v951
    %v953 = vrot.slane %v940, %v952
    %v954 = vlaneseq
    %v955 = vshrl.u32 %v954, 7
    %v956 = vsub.s32 3, %v955
    %v957 = vrot.slane %v940, %v956
    %v962 = vmul.f32 %v938, %v945
    %v963 = vmul.f32 %v937, %v949
    %v964 = vmul.f32 %v936, %v953
    %v965 = vmul.f32 %v939, %v957
    %v966 = vpack.c.bf16 0.0, %v962
    %v967 = vpack.c.bf16 0.0, %v963
    %v968 = vpack.c.bf16 0.0, %v964
    %v969 = vpack.c.bf16 0.0, %v965
    %970 = vst [vmem:[#allocation2 + $0x80] sm:$0xff] %v966
    %971 = vst [vmem:[#allocation2 + $0x88] sm:$0xff] %v967
    %972 = vst [vmem:[#allocation2 + $0x90] sm:$0xff] %v968
    %973 = vst [vmem:[#allocation2 + $0x98] sm:$0xff] %v969
    %v974 = vld [vmem:[%s1 + $0x8] sm:$0xf]
    %v975 = vld [vmem:[#allocation2] sm:$0xff]
    %v976 = vld [vmem:[#allocation2 + $0x8] sm:$0xff]
    %v977 = vld [vmem:[#allocation2 + $0x10] sm:$0xff]
    %v978 = vld [vmem:[#allocation2 + $0x18] sm:$0xff]
    %v979 = vld [vmem:[#allocation2 + $0x20] sm:$0xff]
    %v980 = vld [vmem:[#allocation2 + $0x28] sm:$0xff]
    %v981 = vld [vmem:[#allocation2 + $0x30] sm:$0xff]
    %v982 = vld [vmem:[#allocation2 + $0x38] sm:$0xff]
    %v983 = vld [vmem:[#allocation2 + $0x40] sm:$0xff]
    %v984 = vld [vmem:[#allocation2 + $0x48] sm:$0xff]
    %v985 = vld [vmem:[#allocation2 + $0x50] sm:$0xff]
    %v986 = vld [vmem:[#allocation2 + $0x58] sm:$0xff]
    %v987 = vld [vmem:[#allocation2 + $0x60] sm:$0xff]
    %v988 = vld [vmem:[#allocation2 + $0x68] sm:$0xff]
    %v989 = vld [vmem:[#allocation2 + $0x70] sm:$0xff]
    %v990 = vld [vmem:[#allocation2 + $0x78] sm:$0xff]
    %v991 = vld [vmem:[#allocation2 + $0x80] sm:$0xff]
    %v992 = vld [vmem:[#allocation2 + $0x88] sm:$0xff]
    %v993 = vld [vmem:[#allocation2 + $0x90] sm:$0xff]
    %v994 = vld [vmem:[#allocation2 + $0x98] sm:$0xff]
    %v996 = vsel %vm489, %v974, 0
    %998 = vmatprep.subr.bf16.mxu0 %v976
    %999 = vmatpush1.bf16.msra.mxu0 %v975
    %1000 = vmatprep.subr.bf16.mxu0 %v980
    %1001 = vmatpush1.bf16.msra.mxu0 %v979
    %1002 = vmatprep.subr.bf16.mxu0 %v984
    %1003 = vmatpush1.bf16.msra.mxu0 %v983
    %1004 = vmatprep.subr.bf16.mxu0 %v988
    %1005 = vmatpush1.bf16.msra.mxu0 %v987
    %1006 = vmatprep.subr.bf16.mxu0 %v992
    %1007 = vmatpush1.bf16.msra.mxu0 %v991
    %1008 = vmatprep.subr.bf16.mxu0 0
    %1009 = vmatpush1.bf16.msra.mxu0 0
    %1010 = vmatprep.subr.bf16.mxu0 0
    %1011 = vmatpush1.bf16.msra.mxu0 0
    %1012 = vmatprep.subr.bf16.mxu0 0
    %1013 = vmatpush1.bf16.msra.mxu0 0
    %1014 = vmatprep.subr.bf16.mxu0 0
    %1015 = vmatpush1.bf16.msra.mxu0 0
    %1016 = vmatprep.subr.bf16.mxu0 0
    %1017 = vmatpush1.bf16.msra.mxu0 0
    %1018 = vmatprep.subr.bf16.mxu0 0
    %1019 = vmatpush1.bf16.msra.mxu0 0
    %1020 = vmatprep.subr.bf16.mxu0 0
    %1021 = vmatpush1.bf16.msra.mxu0 0
    %1022 = vmatprep.subr.bf16.mxu0 0
    %1023 = vmatpush1.bf16.msra.mxu0 0
    %1024 = vmatprep.subr.bf16.mxu0 0
    %1025 = vmatpush1.bf16.msra.mxu0 0
    %1026 = vmatprep.subr.bf16.mxu0 0
    %1027 = vmatpush1.bf16.msra.mxu0 0
    %1028 = vmatprep.subr.bf16.mxu0 0
    %1029 = vmatpush1.bf16.msra.mxu0 0
    %1030 = vmatprep.mubr.bf16.mxu0 0
    %1031 = vmatmul.mubr.bf16.gmra.mrb[0].mxu0 %v996
    %v1032 = vpop.f32.mrb[0].mxu0
    %v1033 = vadd.f32 %v532, %v1032
    %v1034 = vpop.f32.mrb[0].mxu0
    %v1035 = vadd.f32 %v534, %v1034
    %v1036 = vpop.f32.mrb[0].mxu0
    %v1037 = vpop.f32.mrb[0].mxu0
    %1038 = vdwg.mxu0
    %1039 = vmatprep.subr.bf16.mxu0 %v978
    %1040 = vmatpush1.bf16.msra.mxu0 %v977
    %1041 = vmatprep.subr.bf16.mxu0 %v982
    %1042 = vmatpush1.bf16.msra.mxu0 %v981
    %1043 = vmatprep.subr.bf16.mxu0 %v986
    %1044 = vmatpush1.bf16.msra.mxu0 %v985
    %1045 = vmatprep.subr.bf16.mxu0 %v990
    %1046 = vmatpush1.bf16.msra.mxu0 %v989
    %1047 = vmatprep.subr.bf16.mxu0 %v994
    %1048 = vmatpush1.bf16.msra.mxu0 %v993
    %1049 = vmatprep.subr.bf16.mxu0 0
    %1050 = vmatpush1.bf16.msra.mxu0 0
    %1051 = vmatprep.subr.bf16.mxu0 0
    %1052 = vmatpush1.bf16.msra.mxu0 0
    %1053 = vmatprep.subr.bf16.mxu0 0
    %1054 = vmatpush1.bf16.msra.mxu0 0
    %1055 = vmatprep.subr.bf16.mxu0 0
    %1056 = vmatpush1.bf16.msra.mxu0 0
    %1057 = vmatprep.subr.bf16.mxu0 0
    %1058 = vmatpush1.bf16.msra.mxu0 0
    %1059 = vmatprep.subr.bf16.mxu0 0
    %1060 = vmatpush1.bf16.msra.mxu0 0
    %1061 = vmatprep.subr.bf16.mxu0 0
    %1062 = vmatpush1.bf16.msra.mxu0 0
    %1063 = vmatprep.subr.bf16.mxu0 0
    %1064 = vmatpush1.bf16.msra.mxu0 0
    %1065 = vmatprep.subr.bf16.mxu0 0
    %1066 = vmatpush1.bf16.msra.mxu0 0
    %1067 = vmatprep.subr.bf16.mxu0 0
    %1068 = vmatpush1.bf16.msra.mxu0 0
    %1069 = vmatprep.subr.bf16.mxu0 0
    %1070 = vmatpush1.bf16.msra.mxu0 0
    %1071 = vmatprep.mubr.bf16.mxu0 0
    %1072 = vmatmul.mubr.bf16.gmra.mrb[0].mxu0 %v996
    %v1073 = vpop.f32.mrb[0].mxu0
    %v1074 = vadd.f32 %v575, %v1073
    %v1075 = vpop.f32.mrb[0].mxu0
    %v1076 = vadd.f32 %v577, %v1075
    %v1077 = vpop.f32.mrb[0].mxu0
    %v1078 = vpop.f32.mrb[0].mxu0
    %1079 = vdwg.mxu0
    %1080 = vst [vmem:[#allocation8] sm:$0xff] %v1033
    %1081 = vst [vmem:[#allocation8 + $0x8] sm:$0xff] %v1035
    %1082 = vst [vmem:[#allocation8 + $0x10] sm:$0xff] %v1074
    %1083 = vst [vmem:[#allocation8 + $0x18] sm:$0xff] %v1076
    // Predicated region
    $region26: #{tpu_custom_call.1} parent=1 // pred_check
      _
    $region27: #{tpu_custom_call.1} parent=1 // pred_check_branch
      %1085 = sbr.rel (0) target = $region29
    $region28: #{tpu_custom_call.1} parent=1 // pred_region
      %s1087 = ssub.s32 512, 512
      %1088 = vsyncadd [#allocation5], %s1087
      %s1090 = sshll.u32 [#allocation8], 4
      %s1091 = int_to_ptr.vmem [resolvable:$true] %s1090
      %1093 = dma.vmem_to_hbm [thread:$0]  %s1091, 512, %s4, [#allocation5]
    $region29: #{tpu_custom_call.1} parent=1 // pred_fallthru
      _
    // Predicated region
    $region30: #{tpu_custom_call.1} parent=1 // pred_check
      _
    $region31: #{tpu_custom_call.1} parent=1 // pred_check_branch
      %1095 = sbr.rel (0) target = $region33
    $region32: #{tpu_custom_call.1} parent=1 // pred_region
      %1096 = dma.done [#allocation5], 512
    $region33: #{tpu_custom_call.1} parent=1 // pred_fallthru
      _
    %1097 = vsyncpa [#allocation4], 1
    %1098 = vsyncpa [#allocation7], 1
    %1099 = vsyncpa [#allocation5], 1

</llo_original>
